<compile_context>
chip_gen: v6e
topology: v6e:2x2x1
jax: 0.10.0
libtpu: 0.0.40
codegen_flags: <defaults>
</compile_context>

<pallas_src>
import functools

import jax
import jax.numpy as jnp
from jax.experimental import pallas as pl
from jax.experimental.pallas import tpu as pltpu

_MIB = 1024 * 1024


# ----------------------------------------------------------------------------
# Kernel 1: per-batch, per-channel (sum, sum of squares). hw axis is a reduction;
# the output block (1, C, 2) stays resident across it, so we accumulate in place.
# ----------------------------------------------------------------------------
def gn_stats_kernel(x_ref, stats_ref):
    hi = pl.program_id(1)
    x = x_ref[0]                                              # (C, t_hw)
    # Lane (XLU) reductions only; single (C, 2) store per step.
    s = jnp.concatenate(
        [jnp.sum(x, axis=1, keepdims=True), jnp.sum(x * x, axis=1, keepdims=True)],
        axis=1)                                               # (C, 2)

    @pl.when(hi == 0)
    def _init():
        stats_ref[0] = s

    @pl.when(hi > 0)
    def _accum():
        stats_ref[0] = stats_ref[0] + s


# ----------------------------------------------------------------------------
# Kernel 2: fused GroupNorm affine + stacked QKV 1x1 conv, tiled over hw.
# q rows of wqkv/bqkv are pre-scaled by C^-0.5 and wqkv is pre-cast (bf16) in the wrapper.
# ----------------------------------------------------------------------------
def norm_qkv_kernel(x_ref, aff_ref, w_ref, b_ref, qkv_ref):
    x = x_ref[0]                                              # (C, t_hw) f32
    a = aff_ref[0][:, 0:1]                                    # (C, 1)
    b = aff_ref[0][:, 1:2]                                    # (C, 1)
    h = (x * a + b).astype(w_ref.dtype)                       # GroupNorm, cast activations only
    qkv = jnp.dot(w_ref[...], h, preferred_element_type=jnp.float32) + b_ref[...]
    qkv_ref[0] = qkv.astype(qkv_ref.dtype)                    # bf16 store on the production path


# ----------------------------------------------------------------------------
# Kernel 3: flash attention (online softmax over kv tiles) + proj_out + residual.
# grid = (B, n_q, n_kv), kv is the reduction axis. Output is emitted in (C, tq)
# layout so no wrapper transposes of x / out are needed.
# ----------------------------------------------------------------------------
def flash_attn_kernel(xres_ref, q_ref, k_ref, v_ref, wp_ref, bp_ref, out_ref,
                      m_ref, l_ref, acc_ref, *, approx_recip):
    ki = pl.program_id(2)

    @pl.when(ki == 0)
    def _init():
        m_ref[...] = jnp.full(m_ref.shape, -jnp.inf, jnp.float32)
        l_ref[...] = jnp.zeros_like(l_ref)
        acc_ref[...] = jnp.zeros_like(acc_ref)

    q = q_ref[0]                                              # (C, tq)  (C^-0.5 folded in, bf16/f32)
    k = k_ref[0]                                              # (C, tk)
    v = v_ref[0]                                              # (C, tk)

    # s[i, j] = sum_c q[c, i] * k[c, j]  -- transpose-free (contract on channel axis)
    s = jax.lax.dot_general(q, k, (((0,), (0,)), ((), ())),
                            preferred_element_type=jnp.float32)        # (tq, tk)

    m_prev = m_ref[...]                                       # (tq, 1)
    m_new = jnp.maximum(m_prev, jnp.max(s, axis=-1, keepdims=True))
    alpha = jnp.exp(m_prev - m_new)                           # (tq, 1)
    p = jnp.exp(s - m_new)                                    # (tq, tk), f32 softmax math (v5e-safe)
    l_ref[...] = alpha * l_ref[...] + jnp.sum(p, axis=-1, keepdims=True)

    # acc[i, c] += sum_j p[i, j] * v[c, j]  -- transpose-free (contract on kv axis)
    pv = jax.lax.dot_general(p.astype(v.dtype), v, (((1,), (1,)), ((), ())),
                             preferred_element_type=jnp.float32)       # (tq, C)
    acc_ref[...] = alpha * acc_ref[...] + pv
    m_ref[...] = m_new

    @pl.when(ki == pl.num_programs(2) - 1)
    def _finalize():
        # Normalize once per q tile (flash); approx reciprocal uses the free EUP slot.
        h = acc_ref[...] * pl.reciprocal(l_ref[...], approx=approx_recip)   # (tq, C)
        h = h.astype(wp_ref.dtype)
        # proj[c, i] = sum_c' wp[c, c'] * h[i, c']  -> (C, tq) output, no post-transpose
        proj = jax.lax.dot_general(wp_ref[...], h, (((1,), (1,)), ((), ())),
                                   preferred_element_type=jnp.float32)      # (C, tq)
        out_ref[0] = xres_ref[0] + proj + bp_ref[...]


# ----------------------------------------------------------------------------
# Wrapper
# ----------------------------------------------------------------------------
def _pick_tile(total, target):
    """Largest tile <= target that divides `total` and is a multiple of 128 (or the full dim)."""
    if total <= target:
        return total
    if total % 128 != 0:
        # TODO(synk): pad HW to a multiple of 128 instead of falling back to an untiled block
        # (a large non-128-multiple spatial size would otherwise blow the VMEM budget).
        return total
    t = (target // 128) * 128
    while total % t != 0:
        t -= 128
    return t


def _vmem_limit(estimate_bytes):
    """Explicit scoped-VMEM limit: 2x headroom, >= 32 MiB, kept under v7x's 64 MiB physical VMEM."""
    return int(min(max(2 * estimate_bytes, 32 * _MIB), 56 * _MIB))


def quant_attn_block(x_nchw, params, *, num_groups=32, eps=1e-6, use_bf16_mxu=True):
    """x_nchw: (B, C, H, W) float32. Matches QuantAttnBlock.forward with use_aq/use_wq=False."""
    B, C, H, W = x_nchw.shape
    assert C % num_groups == 0
    HW = H * W
    cpg = C // num_groups
    x = x_nchw.reshape(B, C, HW)

    qkv_dtype = jnp.bfloat16 if use_bf16_mxu else jnp.float32
    qkv_bytes = 2 if use_bf16_mxu else 4

    # Tiles: big hw/kv tiles to cut re-streamed K/V traffic; cap tq at HW/2 so n_q >= 2
    # (keeps both v7x TensorCores busy at B=1 via the "parallel" q-tile axis).
    t_hw = _pick_tile(HW, 1024)
    tq_target = min(1024, HW // 2) if HW // 2 >= 128 else HW
    tq = _pick_tile(HW, tq_target)
    tk = _pick_tile(HW, 1024)
    n_hw, n_q, n_kv = HW // t_hw, HW // tq, HW // tk

    # Fold the attention scale C^-0.5 into the q projection; stack + pre-cast QKV / proj weights.
    scale = float(C) ** (-0.5)
    wqkv = jnp.concatenate([params["wq"] * scale, params["wk"], params["wv"]],
                           axis=0).astype(qkv_dtype)                                       # (3C, C)
    bqkv = jnp.concatenate([params["bq"] * scale, params["bk"], params["bv"]]).reshape(3 * C, 1)
    wp = params["wp"].astype(qkv_dtype)                                                    # (C, C)
    bp_col = params["bp"].reshape(C, 1)

    # ---- kernel 1: per-channel (sum, sumsq) ----
    stats = pl.pallas_call(
        gn_stats_kernel,
        out_shape=jax.ShapeDtypeStruct((B, C, 2), jnp.float32),
        grid_spec=pltpu.PrefetchScalarGridSpec(
            num_scalar_prefetch=0,
            grid=(B, n_hw),
            in_specs=[pl.BlockSpec((1, C, t_hw), lambda b, h: (b, 0, h))],
            out_specs=pl.BlockSpec((1, C, 2), lambda b, h: (b, 0, 0)),
        ),
        compiler_params=pltpu.CompilerParams(
            dimension_semantics=("parallel", "arbitrary")),
    )(x)

    # Tiny (B, C, 2)-sized GroupNorm epilogue in plain XLA (group combine + affine).
    # NOTE: E[x^2]-E[x]^2 in f32; switch to two-pass if real activations show cancellation drift.
    count = float(cpg * HW)
    stats_g = stats.reshape(B, num_groups, cpg, 2).sum(axis=2)                             # (B, G, 2)
    mean_g = stats_g[..., 0] / count
    var_g = stats_g[..., 1] / count - mean_g * mean_g                                      # biased (PyTorch GN)
    rstd_g = jax.lax.rsqrt(var_g + eps)
    mean_c = jnp.repeat(mean_g, cpg, axis=1)                                               # (B, C)
    rstd_c = jnp.repeat(rstd_g, cpg, axis=1)
    a_c = params["gamma"][None, :] * rstd_c
    b_c = params["beta"][None, :] - mean_c * a_c
    aff = jnp.stack([a_c, b_c], axis=-1)                                                   # (B, C, 2)

    # ---- kernel 2: fused norm affine + stacked QKV conv (bf16 output on production path) ----
    qkv_vmem = 2 * (C * t_hw * 4 + C * 2 * 4 + 3 * C * C * qkv_bytes
                    + 3 * C * 4 + 3 * C * t_hw * qkv_bytes)
    qkv = pl.pallas_call(
        norm_qkv_kernel,
        out_shape=jax.ShapeDtypeStruct((B, 3 * C, HW), qkv_dtype),
        grid_spec=pltpu.PrefetchScalarGridSpec(
            num_scalar_prefetch=0,
            grid=(B, n_hw),
            in_specs=[
                pl.BlockSpec((1, C, t_hw), lambda b, h: (b, 0, h)),   # x
                pl.BlockSpec((1, C, 2), lambda b, h: (b, 0, 0)),      # affine (a, b)
                pl.BlockSpec((3 * C, C), lambda b, h: (0, 0)),        # wqkv (pre-cast)
                pl.BlockSpec((3 * C, 1), lambda b, h: (0, 0)),        # bqkv (f32)
            ],
            out_specs=pl.BlockSpec((1, 3 * C, t_hw), lambda b, h: (b, 0, h)),
        ),
        compiler_params=pltpu.CompilerParams(
            dimension_semantics=("parallel", "parallel"),
            vmem_limit_bytes=_vmem_limit(qkv_vmem)),
    )(x, aff, wqkv, bqkv)

    # ---- kernel 3: flash attention + proj_out + residual, (C, tq) output (no wrapper transposes) ----
    flash_vmem = (2 * (C * tq * 4                 # xres
                       + C * tq * qkv_bytes       # q
                       + 2 * C * tk * qkv_bytes   # k, v
                       + C * tq * 4               # out
                       + C * C * qkv_bytes        # wp
                       + C * 4)                   # bp
                  + tq * C * 4 + 2 * tq * 4)      # scratch
    out = pl.pallas_call(
        functools.partial(flash_attn_kernel, approx_recip=use_bf16_mxu),
        out_shape=jax.ShapeDtypeStruct((B, C, HW), jnp.float32),
        grid_spec=pltpu.PrefetchScalarGridSpec(
            num_scalar_prefetch=0,
            grid=(B, n_q, n_kv),
            in_specs=[
                pl.BlockSpec((1, C, tq), lambda b, q, k: (b, 0, q)),   # residual x (original layout)
                pl.BlockSpec((1, C, tq), lambda b, q, k: (b, 0, q)),   # q   (rows [0, C)   of qkv)
                pl.BlockSpec((1, C, tk), lambda b, q, k: (b, 1, k)),   # k   (rows [C, 2C))
                pl.BlockSpec((1, C, tk), lambda b, q, k: (b, 2, k)),   # v   (rows [2C, 3C))
                pl.BlockSpec((C, C), lambda b, q, k: (0, 0)),          # w_proj (pre-cast)
                pl.BlockSpec((C, 1), lambda b, q, k: (0, 0)),          # b_proj (f32)
            ],
            out_specs=pl.BlockSpec((1, C, tq), lambda b, q, k: (b, 0, q)),
            scratch_shapes=[
                pltpu.VMEM((tq, 1), jnp.float32),   # m (running max)
                pltpu.VMEM((tq, 1), jnp.float32),   # l (running denom)
                pltpu.VMEM((tq, C), jnp.float32),   # acc
            ],
        ),
        compiler_params=pltpu.CompilerParams(
            dimension_semantics=("parallel", "parallel", "arbitrary"),
            vmem_limit_bytes=_vmem_limit(flash_vmem)),
    )(x, qkv, qkv, qkv, wp, bp_col)

    return out.reshape(B, C, H, W)


# ----------------------------------------------------------------------------
# Pure-JAX reference mirroring the PyTorch forward (use_aq=False -> quantizers are identity)
# ----------------------------------------------------------------------------
def reference_jax(x_nchw, params, *, num_groups=32, eps=1e-6):
    B, C, H, W = x_nchw.shape
    HW = H * W
    x = x_nchw.reshape(B, C, HW)

    xg = x.reshape(B, num_groups, (C // num_groups) * HW)
    mean = xg.mean(-1, keepdims=True)
    var = xg.var(-1, keepdims=True)
    h = ((xg - mean) / jnp.sqrt(var + eps)).reshape(B, C, HW)
    h = h * params["gamma"][None, :, None] + params["beta"][None, :, None]

    conv = lambda w, bb, t: jnp.einsum("oc,bcn->bon", w, t) + bb[None, :, None]
    q = conv(params["wq"], params["bq"], h)
    k = conv(params["wk"], params["bk"], h)
    v = conv(params["wv"], params["bv"], h)

    w_ = jnp.einsum("bci,bcj->bij", q, k) * (float(C) ** -0.5)
    w_ = jax.nn.softmax(w_, axis=2)
    h_out = jnp.einsum("bck,bik->bci", v, w_)
    proj = conv(params["wp"], params["bp"], h_out)
    return (x + proj).reshape(B, C, H, W)


if __name__ == "__main__":
    B, C, H, W = 2, 32, 8, 8   # C=32 so GroupNorm(32, C) is valid, as in AttnBlock
    key = jax.random.PRNGKey(0)
    ks = jax.random.split(key, 12)

    x = jax.random.normal(ks[0], (B, C, H, W), dtype=jnp.float32)

    def conv_w(k):
        return jax.random.normal(k, (C, C), dtype=jnp.float32) * 0.05

    params = {
        "gamma": 1.0 + 0.1 * jax.random.normal(ks[1], (C,), dtype=jnp.float32),
        "beta": 0.1 * jax.random.normal(ks[2], (C,), dtype=jnp.float32),
        "wq": conv_w(ks[3]), "bq": 0.01 * jax.random.normal(ks[4], (C,), dtype=jnp.float32),
        "wk": conv_w(ks[5]), "bk": 0.01 * jax.random.normal(ks[6], (C,), dtype=jnp.float32),
        "wv": conv_w(ks[7]), "bv": 0.01 * jax.random.normal(ks[8], (C,), dtype=jnp.float32),
        "wp": conv_w(ks[9]), "bp": 0.01 * jax.random.normal(ks[10], (C,), dtype=jnp.float32),
    }

    ref = reference_jax(x, params)

    # f32 path: strict check against the reference.
    out_f32 = jax.block_until_ready(quant_attn_block(x, params, use_bf16_mxu=False))
    assert out_f32.shape == (B, C, H, W)
    assert jnp.allclose(out_f32, ref, atol=1e-4, rtol=1e-4), "f32 path mismatch vs JAX reference"

    # Production default (bf16 MXU, f32 softmax math): looser tolerance.
    out_bf16 = jax.block_until_ready(quant_attn_block(x, params))
    assert out_bf16.shape == (B, C, H, W)
    assert jnp.allclose(out_bf16, ref, atol=5e-2, rtol=5e-2), "bf16 path mismatch vs JAX reference"

    print("KERNEL_OK")
</pallas_src>

<mosaic_0001>
module attributes {stable_mosaic.version = 11 : i64} {
  func.func @gn_stats_kernel(%arg0: i32, %arg1: i32, %arg2: memref<1x32x64xf32, #tpu.memory_space<vmem>>, %arg3: memref<1x32x2xf32, #tpu.memory_space<vmem>>) attributes {dimension_semantics = [#tpu.dimension_semantics<parallel>, #tpu.dimension_semantics<arbitrary>], iteration_bounds = array<i64: 2, 1>, scalar_prefetch = 0 : i64, scratch_operands = 0 : i64, tpu.core_type = #tpu.core_type<tc>, window_params = [{transform_indices = @transform_0, window_bounds = array<i64: 1, 32, 64>}, {transform_indices = @transform_1, window_bounds = array<i64: 1, 32, 2>}]} {
    %c0 = arith.constant 0 : index
    %c0_0 = arith.constant 0 : index
    %c0_1 = arith.constant 0 : index
    %0 = vector.load %arg2[%c0, %c0_0, %c0_1] : memref<1x32x64xf32, #tpu.memory_space<vmem>>, vector<1x32x64xf32>
    %1 = vector.shape_cast %0 : vector<1x32x64xf32> to vector<32x64xf32>
    %cst = arith.constant dense<0.000000e+00> : vector<32xf32>
    %2 = vector.multi_reduction <add>, %1, %cst [1] : vector<32x64xf32> to vector<32xf32>
    %3 = vector.shape_cast %2 : vector<32xf32> to vector<32x1xf32>
    %4 = arith.mulf %1, %1 : vector<32x64xf32>
    %cst_2 = arith.constant dense<0.000000e+00> : vector<32xf32>
    %5 = vector.multi_reduction <add>, %4, %cst_2 [1] : vector<32x64xf32> to vector<32xf32>
    %6 = vector.shape_cast %5 : vector<32xf32> to vector<32x1xf32>
    %7 = tpu.concatenate %3, %6 in 1 : vector<32x1xf32>, vector<32x1xf32> -> vector<32x2xf32>
    %c0_i32 = arith.constant 0 : i32
    %8 = arith.cmpi eq, %arg1, %c0_i32 : i32
    %9 = arith.extui %8 : i1 to i32
    %c0_i32_3 = arith.constant 0 : i32
    %10 = arith.cmpi ne, %9, %c0_i32_3 : i32
    scf.if %10 {
      %c0_6 = arith.constant 0 : index
      %c0_7 = arith.constant 0 : index
      %c0_8 = arith.constant 0 : index
      %14 = vector.load %arg3[%c0_6, %c0_7, %c0_8] : memref<1x32x2xf32, #tpu.memory_space<vmem>>, vector<1x32x2xf32>
      %15 = vector.shape_cast %14 : vector<1x32x2xf32> to vector<32x2xf32>
      %16 = vector.shape_cast %7 : vector<32x2xf32> to vector<1x32x2xf32>
      tpu.vector_store %arg3[%c0_6, %c0_7, %c0_8], %16 {strides = array<i32>} : memref<1x32x2xf32, #tpu.memory_space<vmem>>, vector<1x32x2xf32>,
    } else {
    }
    %c0_i32_4 = arith.constant 0 : i32
    %11 = arith.cmpi sgt, %arg1, %c0_i32_4 : i32
    %12 = arith.extui %11 : i1 to i32
    %c0_i32_5 = arith.constant 0 : i32
    %13 = arith.cmpi ne, %12, %c0_i32_5 : i32
    scf.if %13 {
      %c0_6 = arith.constant 0 : index
      %c0_7 = arith.constant 0 : index
      %c0_8 = arith.constant 0 : index
      %14 = vector.load %arg3[%c0_6, %c0_7, %c0_8] : memref<1x32x2xf32, #tpu.memory_space<vmem>>, vector<1x32x2xf32>
      %15 = vector.shape_cast %14 : vector<1x32x2xf32> to vector<32x2xf32>
      %16 = arith.addf %15, %7 : vector<32x2xf32>
      %c0_9 = arith.constant 0 : index
      %c0_10 = arith.constant 0 : index
      %c0_11 = arith.constant 0 : index
      %17 = vector.load %arg3[%c0_9, %c0_10, %c0_11] : memref<1x32x2xf32, #tpu.memory_space<vmem>>, vector<1x32x2xf32>
      %18 = vector.shape_cast %17 : vector<1x32x2xf32> to vector<32x2xf32>
      %19 = vector.shape_cast %16 : vector<32x2xf32> to vector<1x32x2xf32>
      tpu.vector_store %arg3[%c0_9, %c0_10, %c0_11], %19 {strides = array<i32>} : memref<1x32x2xf32, #tpu.memory_space<vmem>>, vector<1x32x2xf32>,
    } else {
    }
    return
  }
  func.func @transform_0(%arg0: i32, %arg1: i32) -> (i32, i32, i32) {
    %c0_i32 = arith.constant 0 : i32
    %c0_i32_0 = arith.constant 0 : i32
    return %arg0, %c0_i32, %arg1 : i32, i32, i32
  }
  func.func @transform_1(%arg0: i32, %arg1: i32) -> (i32, i32, i32) {
    %c0_i32 = arith.constant 0 : i32
    %c0_i32_0 = arith.constant 0 : i32
    %c0_i32_1 = arith.constant 0 : i32
    return %arg0, %c0_i32, %c0_i32_0 : i32, i32, i32
  }
}

</mosaic_0001>

<llo_original>
// kernel: tpu_custom_call.1
$region0: #{tpu_custom_call.1}
  #allocation0 [shape = 'u32[]', space=smem, size = 0x4, offset = 0x4, fixed_abs, tag = 'smem constant byte address 0x4 - core index']
  #allocation1 [shape = 'u32[144,128]{1,0:T(1,128)}', space=vmem, size = 0x12000, scoped, tag = 'internal scratch']
  %s0 = inlined_call_operand.hbm [shape: f32[2,32,64], index: 0, kind: input, shape index: {}]
  %s1 = inlined_call_operand.vmem [shape: f32[2,32,2], index: 1, kind: output, shape index: {}]
  %s2 = sld [smem:[#allocation0]]
  $region49: #{tpu_custom_call.1} parent=0
    _
  %s4 = ssub.s32 1, %s2
  %s5 = scalar_select 0, %s4, %s2
  $region1: #{tpu_custom_call.1} parent=0
    #allocation2 [shape = 'u8[32768]{0}', space=vmem, size = 0x8000, scoped, tag = 'input window, operand 0']
    #allocation3 [shape = 's32[2]{0}', space=sflag, size = 0x8, scoped, tag = 'scoped memory for tpu_custom_call.1']
    %6 = vsyncpa [#allocation3], 0
    %s7 = scalar_lea.sflag [#allocation3], 1
    %8 = vsyncpa %s7, 0
    loop: start=0, step=1, limit=4
    $region2: #{tpu_custom_call.1} parent=1 // loop_pre_header
      _
    $region3: #{tpu_custom_call.1} parent=1 // loop_header
      %s10 = sphi 0, %s14
      %p11 = scmp.ge.s32.totalorder %s10, 4
      %s17 = sphi 0, %s29
      %s18 = sphi 0, %s25
      %s19 = sphi 0, %s17
      %s20 = sphi 0, %s18
      %s21 = sphi 0, %s19
      %s22 = sphi 0, %s20
      %s34 = sphi 0, %s36
      %s37 = sphi 0, %s34
      %s38 = sphi 0, %s37
      %s54 = sphi 0, %s38
      %s60 = sphi 0, %s62
      %s63 = sphi 0, %s60
      %s64 = sphi 0, %s63
      %s80 = sphi 0, %s64
    $region4: #{tpu_custom_call.1} parent=1 // loop_header_branch
      %13 = sbr.rel (%p11) target = $region8
    $region5: #{tpu_custom_call.1} parent=1 // loop_body
      %s15 = ssub.s32 %s10, 1
      %s16 = ssub.s32 %s10, 2
      %s23 = sadd.s32 1, %s18
      %p24 = scmp.ge.s32.totalorder %s23, 1
      %s25 = scalar_select %p24, 0, %s23
      %s26 = sadd.s32 1, %s17
      %s27 = scalar_select %p24, %s26, %s17
      %p28 = scmp.ge.s32.totalorder %s27, 2
      %s29 = scalar_select %p28, 0, %s27
      %s30 = ssub.s32 %s17, %s29
      %s31 = ssub.s32 %s18, %s25
      %s32 = sor.u32 %s30, %s31
      %p33 = scmp.eq.s32.totalorder %s32, 0
      %s35 = sadd.s32 %s34, 1
      %s36 = scalar_select %p33, %s34, %s35
      %p39 = pneg %p33
      %p40 = scmp.eq.s32.totalorder %s10, 1
      %p41 = por %p39, %p40
      %p42 = scmp.ne.s32.totalorder %s34, %s37
      %p43 = scmp.eq.s32.totalorder %s10, 0
      %p44 = por %p42, %p43
      %p45 = scmp.ne.s32.totalorder %s34, %s37
      %p46 = scmp.eq.s32.totalorder %s15, 1
      %p47 = por %p45, %p46
      %p48 = scmp.ne.s32.totalorder %s37, %s38
      %p49 = scmp.eq.s32.totalorder %s15, 0
      %p50 = por %p48, %p49
      %p51 = scmp.ne.s32.totalorder %s37, %s38
      %p52 = scmp.eq.s32.totalorder %s16, 1
      %p53 = por %p51, %p52
      %p55 = scmp.ne.s32.totalorder %s38, %s54
      %p56 = scmp.eq.s32.totalorder %s16, 0
      %p57 = por %p55, %p56
      %s58 = ssub.s32 %s17, %s29
      %p59 = scmp.eq.s32.totalorder %s58, 0
      %s61 = sadd.s32 %s60, 1
      %s62 = scalar_select %p59, %s60, %s61
      %p65 = pneg %p59
      %p66 = scmp.eq.s32.totalorder %s10, 1
      %p67 = por %p65, %p66
      %p68 = scmp.ne.s32.totalorder %s60, %s63
      %p69 = scmp.eq.s32.totalorder %s10, 0
      %p70 = por %p68, %p69
      %p71 = scmp.ne.s32.totalorder %s60, %s63
      %p72 = scmp.eq.s32.totalorder %s15, 1
      %p73 = por %p71, %p72
      %p74 = scmp.ne.s32.totalorder %s63, %s64
      %p75 = scmp.eq.s32.totalorder %s15, 0
      %p76 = por %p74, %p75
      %p77 = scmp.ne.s32.totalorder %s63, %s64
      %p78 = scmp.eq.s32.totalorder %s16, 1
      %p79 = por %p77, %p78
      %p81 = scmp.ne.s32.totalorder %s64, %s80
      %p82 = scmp.eq.s32.totalorder %s16, 0
      %p83 = por %p81, %p82
      %p84 = scmp.le.s32.totalorder 1, %s10
      %p85 = scmp.lt.s32.totalorder %s10, 3
      %p86 = pnand %p84, %p85
      %p87 = pneg %p86
      // Predicated region
      $region9: #{tpu_custom_call.1} parent=5 // pred_check
        _
      $region10: #{tpu_custom_call.1} parent=5 // pred_check_branch
        %89 = sbr.rel (%p86) target = $region12
      $region11: #{tpu_custom_call.1} parent=5 // pred_region
        %s90 = ssub.s32 %s10, 1
      $region12: #{tpu_custom_call.1} parent=5 // pred_fallthru
        _
      %p91 = scmp.lt.s32.totalorder %s10, 2
      // Predicated region
      $region13: #{tpu_custom_call.1} parent=5 // pred_check
        %p92 = pneg %p91
      $region14: #{tpu_custom_call.1} parent=5 // pred_check_branch
        %94 = sbr.rel (%p92) target = $region16
      $region15: #{tpu_custom_call.1} parent=5 // pred_region
        // Predicated region
        $region17: #{tpu_custom_call.1} parent=15 // pred_check
          %p95 = pneg %p44
        $region18: #{tpu_custom_call.1} parent=15 // pred_check_branch
          %97 = sbr.rel (%p95) target = $region20
        $region19: #{tpu_custom_call.1} parent=15 // pred_region
          %s98 = sand.u32 %s34, 1
          %s99 = scalar_lea.sflag [#allocation3], %s98
          %s100 = sand.u32 %s34, 1
          %s101 = smul.addr %s100, 32
          %s102 = scalar_lea.vmem [#allocation2], %s101
          %s104 = ssub.s32 512, 512
          %105 = vsyncadd %s99, %s104
          %s106 = smul.addr %s17, 4
          %s107 = sadd.s32 %s18, %s106
          %s108 = smul.addr %s107, 128
          %s109 = scalar_lea.hbm %s0, %s108
          %s110 = sshll.u32 %s102, 4
          %s111 = int_to_ptr.vmem [resolvable:$true] %s110
          %116 = dma.hbm_to_vmem [thread:$0]  %s109, 512, %s111, %s99, 128, 128, 8
        $region20: #{tpu_custom_call.1} parent=15 // pred_fallthru
          _
      $region16: #{tpu_custom_call.1} parent=5 // pred_fallthru
        _
      %p117 = scmp.le.s32.totalorder 1, %s10
      %p118 = scmp.lt.s32.totalorder %s10, 3
      %p119 = pnand %p117, %p118
      %p120 = pneg %p119
      // Predicated region
      $region21: #{tpu_custom_call.1} parent=5 // pred_check
        _
      $region22: #{tpu_custom_call.1} parent=5 // pred_check_branch
        %122 = sbr.rel (%p119) target = $region24
      $region23: #{tpu_custom_call.1} parent=5 // pred_region
        %s123 = ssub.s32 %s10, 1
        %s124 = sand.u32 %s37, 1
        %s125 = scalar_lea.sflag [#allocation3], %s124
        %s126 = sand.u32 %s37, 1
        %s127 = smul.addr %s126, 32
        %s128 = scalar_lea.vmem [#allocation2], %s127
        // Predicated region
        $region25: #{tpu_custom_call.1} parent=23 // pred_check
          %p129 = pneg %p50
        $region26: #{tpu_custom_call.1} parent=23 // pred_check_branch
          %131 = sbr.rel (%p129) target = $region28
        $region27: #{tpu_custom_call.1} parent=23 // pred_region
          %132 = dma.done %s125, 512
        $region28: #{tpu_custom_call.1} parent=23 // pred_fallthru
          _
        %s133 = sand.u32 %s37, 1
        %s134 = scalar_lea.sflag [#allocation3], %s133
        %s135 = sand.u32 %s37, 1
        %s136 = smul.addr %s135, 32
        %s137 = scalar_lea.vmem [#allocation2], %s136
        %p138 = pneg %p50
        %p139 = pneg %p47
        %p140 = pneg %p76
        %p141 = pneg %p73
        %p142 = scmp.lt.s32.totalorder %s19, 1
        %s143 = scalar_select %p142, %s19, 1
        %s144 = smul.addr %s143, 4
        %s145 = smul.addr %s144, 8
        %s146 = scalar_lea.vmem %s1, %s145
        %p147 = scmp.lt.s32.totalorder %s19, 1
        %s148 = scalar_select %p147, %s19, 1
        %s149 = smul.addr %s148, 4
        %s150 = smul.addr %s149, 8
        %s151 = scalar_lea.vmem %s1, %s150
        %v152 = vld [vmem:[%s128] sm:$0xff]
        %v153 = vld [vmem:[%s128 + $0x8] sm:$0xff]
        %v154 = vld [vmem:[%s128 + $0x10] sm:$0xff]
        %v155 = vld [vmem:[%s128 + $0x18] sm:$0xff]
        %vm156 = vcmask 523264
        %v157 = vsel %vm156, %v152, 0.0
        %158 = vadd.xlane.f32.xlu0 %v157
        %v159 = vpop.xlane.xlu0 %158
        %v160 = vsel %vm156, %v153, 0.0
        %161 = vadd.xlane.f32.xlu0 %v160
        %v162 = vpop.xlane.xlu0 %161
        %v163 = vsel %vm156, %v154, 0.0
        %164 = vadd.xlane.f32.xlu0 %v163
        %v165 = vpop.xlane.xlu0 %164
        %v166 = vsel %vm156, %v155, 0.0
        %167 = vadd.xlane.f32.xlu0 %v166
        %v168 = vpop.xlane.xlu0 %167
        %v169 = vmul.f32 %v152, %v152
        %v170 = vmul.f32 %v153, %v153
        %v171 = vmul.f32 %v154, %v154
        %v172 = vmul.f32 %v155, %v155
        %v173 = vsel %vm156, %v169, 0.0
        %174 = vadd.xlane.f32.xlu0 %v173
        %v175 = vpop.xlane.xlu0 %174
        %v176 = vsel %vm156, %v170, 0.0
        %177 = vadd.xlane.f32.xlu0 %v176
        %v178 = vpop.xlane.xlu0 %177
        %v179 = vsel %vm156, %v171, 0.0
        %180 = vadd.xlane.f32.xlu0 %v179
        %v181 = vpop.xlane.xlu0 %180
        %v182 = vsel %vm156, %v172, 0.0
        %183 = vadd.xlane.f32.xlu0 %v182
        %v184 = vpop.xlane.xlu0 %183
        %vm185 = vcmask 7168
        %v186 = vsel %vm185, %v159, %v175
        %v187 = vsel %vm185, %v162, %v178
        %v188 = vsel %vm185, %v165, %v181
        %v189 = vsel %vm185, %v168, %v184
        %p190 = scmp.eq.s32.totalorder %s20, 0
        // Predicated region
        $region29: #{tpu_custom_call.1} parent=23 // pred_check
          %p191 = pneg %p190
        $region30: #{tpu_custom_call.1} parent=23 // pred_check_branch
          %193 = sbr.rel (%p191) target = $region32
        $region31: #{tpu_custom_call.1} parent=23 // pred_region
          %vm194 = vcmask 15360
          %195 = vst.msk [vmem:[%s151] sm:$0xff] %vm194, %v186
          %196 = vst.msk [vmem:[%s151 + $0x8] sm:$0xff] %vm194, %v187
          %197 = vst.msk [vmem:[%s151 + $0x10] sm:$0xff] %vm194, %v188
          %198 = vst.msk [vmem:[%s151 + $0x18] sm:$0xff] %vm194, %v189
        $region32: #{tpu_custom_call.1} parent=23 // pred_fallthru
          _
        %p199 = scmp.gt.s32.totalorder %s20, 0
        // Predicated region
        $region33: #{tpu_custom_call.1} parent=23 // pred_check
          %p200 = pneg %p199
        $region34: #{tpu_custom_call.1} parent=23 // pred_check_branch
          %202 = sbr.rel (%p200) target = $region36
        $region35: #{tpu_custom_call.1} parent=23 // pred_region
          %v203 = vld [vmem:[%s151] sm:$0xff]
          %v204 = vld [vmem:[%s151 + $0x8] sm:$0xff]
          %v205 = vld [vmem:[%s151 + $0x10] sm:$0xff]
          %v206 = vld [vmem:[%s151 + $0x18] sm:$0xff]
          %v207 = vadd.f32 %v203, %v186
          %v208 = vadd.f32 %v204, %v187
          %v209 = vadd.f32 %v205, %v188
          %v210 = vadd.f32 %v206, %v189
          %vm211 = vcmask 15360
          %212 = vst.msk [vmem:[%s151] sm:$0xff] %vm211, %v207
          %213 = vst.msk [vmem:[%s151 + $0x8] sm:$0xff] %vm211, %v208
          %214 = vst.msk [vmem:[%s151 + $0x10] sm:$0xff] %vm211, %v209
          %215 = vst.msk [vmem:[%s151 + $0x18] sm:$0xff] %vm211, %v210
        $region36: #{tpu_custom_call.1} parent=23 // pred_fallthru
          _
        %p216 = scmp.lt.s32.totalorder %s19, 1
        %s217 = scalar_select %p216, %s19, 1
        %s218 = smul.addr %s217, 4
        %s219 = smul.addr %s218, 8
        %s220 = scalar_lea.vmem %s1, %s219
        // Predicated region
        $region37: #{tpu_custom_call.1} parent=23 // pred_check
          %p221 = pneg %p73
        $region38: #{tpu_custom_call.1} parent=23 // pred_check_branch
          %223 = sbr.rel (%p221) target = $region40
        $region39: #{tpu_custom_call.1} parent=23 // pred_region
          _
        $region40: #{tpu_custom_call.1} parent=23 // pred_fallthru
          _
      $region24: #{tpu_custom_call.1} parent=5 // pred_fallthru
        _
      %p224 = scmp.le.s32.totalorder 2, %s10
      // Predicated region
      $region41: #{tpu_custom_call.1} parent=5 // pred_check
        %p225 = pneg %p224
      $region42: #{tpu_custom_call.1} parent=5 // pred_check_branch
        %227 = sbr.rel (%p225) target = $region44
      $region43: #{tpu_custom_call.1} parent=5 // pred_region
        %s228 = ssub.s32 %s10, 2
        // Predicated region
        $region45: #{tpu_custom_call.1} parent=43 // pred_check
          %p229 = pneg %p79
        $region46: #{tpu_custom_call.1} parent=43 // pred_check_branch
          %231 = sbr.rel (%p229) target = $region48
        $region47: #{tpu_custom_call.1} parent=43 // pred_region
          %p232 = scmp.lt.s32.totalorder %s21, 1
          %s233 = scalar_select %p232, %s21, 1
          %s234 = smul.addr %s233, 4
          %s235 = smul.addr %s234, 8
          %s236 = scalar_lea.vmem %s1, %s235
        $region48: #{tpu_custom_call.1} parent=43 // pred_fallthru
          _
      $region44: #{tpu_custom_call.1} parent=5 // pred_fallthru
        _
    $region6: #{tpu_custom_call.1} parent=1 // loop_footer
      %s14 = sadd.s32 1, %s10
    $region7: #{tpu_custom_call.1} parent=1 // loop_footer_branch
      %9 = sbr.rel target = $region3
    $region8: #{tpu_custom_call.1} parent=1 // loop_exit
      _
    %237 = vsyncpa [#allocation3], 1
    %s238 = scalar_lea.sflag [#allocation3], 1
    %239 = vsyncpa %s238, 1

</llo_original>
